<compile_context>
chip_gen: v6e
topology: v6e:2x2x1
jax: 0.10.0
libtpu: 0.0.40
codegen_flags: <defaults>
</compile_context>

<pallas_src>
import functools

import jax
import jax.numpy as jnp
from jax.experimental import pallas as pl
from jax.experimental.pallas import tpu as pltpu

# ----------------------------- model dims --------------------------------
TARGET_POINTS = 50
INPUT_DIM = TARGET_POINTS * 2      # 100
LATENT_DIM = 48
HIDDEN_DIM = 256                   # hidden//2 = 128, hidden//4 = 64
LANE = 128                         # TPU lane width
LV_LANE_OFFSET = 64                # logvar lanes [64, 112) in the fused head


# ------------------------------- kernel ----------------------------------
def _vae_kernel(
    # activations (batch-tiled, natural widths)
    x_ref, eps_ref,
    # encoder weights (VMEM-resident, constant index_map)
    ew1_ref, eb1_ref, ew2_ref, eb2_ref, ew3_ref, eb3_ref,
    # fused mu||logvar head (mu lanes [0,48), logvar lanes [64,112))
    wml_ref, bml_ref,
    # decoder weights
    dw1_ref, db1_ref, dw2_ref, db2_ref, dw3_ref, db3_ref, dw4_ref, db4_ref,
    # outputs (batch-tiled, natural widths)
    recon_ref, mu_ref, logvar_ref,
):
    f32 = jnp.float32
    relu = lambda t: jnp.maximum(t, 0.0)

    # -------- encoder --------
    # TODO(synk): nn.Dropout is stochastic in train mode; eval-mode identity here.
    h = relu(jnp.dot(x_ref[...], ew1_ref[...], preferred_element_type=f32) + eb1_ref[...])
    h = relu(jnp.dot(h, ew2_ref[...], preferred_element_type=f32) + eb2_ref[...])
    h = relu(jnp.dot(h, ew3_ref[...], preferred_element_type=f32) + eb3_ref[...])

    # -------- fused mu || logvar head: one (K=64, N=128) matmul --------
    ml = jnp.dot(h, wml_ref[...], preferred_element_type=f32) + bml_ref[...]
    mu = ml[:, :LATENT_DIM]                                   # lanes [0,48)
    logvar = pltpu.roll(ml, shift=LV_LANE_OFFSET, axis=1)[:, :LATENT_DIM]
    mu_ref[...] = mu
    logvar_ref[...] = logvar

    # -------- reparameterize: z = mu + eps * exp(0.5*logvar) --------
    z = mu + eps_ref[...] * jnp.exp(0.5 * logvar)

    # -------- decoder --------
    d = relu(jnp.dot(z, dw1_ref[...], preferred_element_type=f32) + db1_ref[...])
    d = relu(jnp.dot(d, dw2_ref[...], preferred_element_type=f32) + db2_ref[...])
    d = relu(jnp.dot(d, dw3_ref[...], preferred_element_type=f32) + db3_ref[...])
    recon_ref[...] = jnp.tanh(
        jnp.dot(d, dw4_ref[...], preferred_element_type=f32) + db4_ref[...])


# ------------------------------ wrapper -----------------------------------
def _cdiv(a, b):
    return -(-a // b)


def _round_up(n, m):
    return ((n + m - 1) // m) * m


def _choose_tb(B, block_b):
    """Batch tile: multiple of 8, <= block_b, and >= 2 grid steps when B > 8
    (so the "parallel" batch axis can be sharded across v7x's two TCs)."""
    if B <= 8:
        return B                      # block equals full batch dim (legal)
    return max(8, min(block_b, _round_up(_cdiv(B, 2), 8)))


@functools.partial(jax.jit, static_argnames=("block_b",))
def airfoil_vae_forward(x, eps, kernel_params, *, block_b=1024):
    """x: (B, 50, 2) or (B, 100); eps: (B, 48); kernel_params from prepare_kernel_params.

    block_b=1024 keeps per-step VMEM a few MiB (fits v5e's 16 MiB scoped
    default); raise vmem_limit_bytes if you push it past ~2048.
    """
    B = x.shape[0]
    x2 = x.reshape(B, -1).astype(jnp.float32)        # matches x.view(x.size(0), -1)
    eps2 = eps.astype(jnp.float32)

    TB = _choose_tb(B, block_b)
    grid = (_cdiv(B, TB),)                           # ragged last block is fine

    order = ["ew1", "eb1", "ew2", "eb2", "ew3", "eb3", "wml", "bml",
             "dw1", "db1", "dw2", "db2", "dw3", "db3", "dw4", "db4"]
    weights = [kernel_params[k] for k in order]

    act_spec = lambda w: pl.BlockSpec((TB, w), lambda i: (i, 0))
    const_spec = lambda a: pl.BlockSpec(a.shape, lambda i: (0, 0))  # VMEM-resident

    out_shapes = (
        jax.ShapeDtypeStruct((B, INPUT_DIM), jnp.float32),   # recon
        jax.ShapeDtypeStruct((B, LATENT_DIM), jnp.float32),  # mu
        jax.ShapeDtypeStruct((B, LATENT_DIM), jnp.float32),  # logvar
    )

    recon, mu, logvar = pl.pallas_call(
        _vae_kernel,
        grid=grid,
        out_shape=out_shapes,
        in_specs=[act_spec(INPUT_DIM), act_spec(LATENT_DIM)]
        + [const_spec(a) for a in weights],
        out_specs=(act_spec(INPUT_DIM), act_spec(LATENT_DIM), act_spec(LATENT_DIM)),
        compiler_params=pltpu.CompilerParams(
            dimension_semantics=("parallel",),
        ),
    )(x2, eps2, *weights)

    return recon, mu, logvar


# --------------------------- parameter helpers -----------------------------
def init_params(key):
    """Logical (unpadded) params. Weights stored as (in, out); biases as (1, out)."""
    dims = {
        "e1": (INPUT_DIM, HIDDEN_DIM),             # 100 -> 256
        "e2": (HIDDEN_DIM, HIDDEN_DIM // 2),       # 256 -> 128
        "e3": (HIDDEN_DIM // 2, HIDDEN_DIM // 4),  # 128 -> 64
        "mu": (HIDDEN_DIM // 4, LATENT_DIM),       # 64 -> 48
        "lv": (HIDDEN_DIM // 4, LATENT_DIM),       # 64 -> 48
        "d1": (LATENT_DIM, HIDDEN_DIM // 4),       # 48 -> 64
        "d2": (HIDDEN_DIM // 4, HIDDEN_DIM // 2),  # 64 -> 128
        "d3": (HIDDEN_DIM // 2, HIDDEN_DIM),       # 128 -> 256
        "d4": (HIDDEN_DIM, INPUT_DIM),             # 256 -> 100
    }
    name_map = {
        "e1": ("ew1", "eb1"), "e2": ("ew2", "eb2"), "e3": ("ew3", "eb3"),
        "mu": ("wmu", "bmu"), "lv": ("wlv", "blv"),
        "d1": ("dw1", "db1"), "d2": ("dw2", "db2"),
        "d3": ("dw3", "db3"), "d4": ("dw4", "db4"),
    }
    params = {}
    keys = jax.random.split(key, 2 * len(dims))
    for i, (layer, (fan_in, fan_out)) in enumerate(dims.items()):
        wk, bk = keys[2 * i], keys[2 * i + 1]
        bound = 1.0 / jnp.sqrt(fan_in)  # nn.Linear default U(-1/sqrt(in), 1/sqrt(in))
        w = jax.random.uniform(wk, (fan_in, fan_out), jnp.float32, -bound, bound)
        b = jax.random.uniform(bk, (1, fan_out), jnp.float32, -bound, bound)
        wn, bn = name_map[layer]
        params[wn] = w
        params[bn] = b
    return params


def prepare_kernel_params(params):
    """Keep all layers at their natural shapes; fuse mu/logvar into one
    128-lane head (mu lanes [0,48), logvar lanes [64,112), other lanes zero)."""
    H4 = HIDDEN_DIM // 4
    p = {k: params[k] for k in
         ["ew1", "eb1", "ew2", "eb2", "ew3", "eb3",
          "dw1", "db1", "dw2", "db2", "dw3", "db3", "dw4", "db4"]}

    wml = jnp.zeros((H4, LANE), jnp.float32)
    wml = wml.at[:, :LATENT_DIM].set(params["wmu"])
    wml = wml.at[:, LV_LANE_OFFSET:LV_LANE_OFFSET + LATENT_DIM].set(params["wlv"])
    bml = jnp.zeros((1, LANE), jnp.float32)
    bml = bml.at[:, :LATENT_DIM].set(params["bmu"])
    bml = bml.at[:, LV_LANE_OFFSET:LV_LANE_OFFSET + LATENT_DIM].set(params["blv"])
    p["wml"], p["bml"] = wml, bml                    # (64, 128), (1, 128)
    return p


def reference_forward(x, eps, params):
    """Plain-JAX reference for a sanity check."""
    B = x.shape[0]
    h = x.reshape(B, -1).astype(jnp.float32)
    relu = lambda t: jnp.maximum(t, 0.0)
    h = relu(h @ params["ew1"] + params["eb1"])
    h = relu(h @ params["ew2"] + params["eb2"])
    h = relu(h @ params["ew3"] + params["eb3"])
    mu = h @ params["wmu"] + params["bmu"]
    logvar = h @ params["wlv"] + params["blv"]
    z = mu + eps * jnp.exp(0.5 * logvar)
    d = relu(z @ params["dw1"] + params["db1"])
    d = relu(d @ params["dw2"] + params["db2"])
    d = relu(d @ params["dw3"] + params["db3"])
    d = jnp.tanh(d @ params["dw4"] + params["db4"])
    return d, mu, logvar


if __name__ == "__main__":
    key = jax.random.PRNGKey(0)
    k_params, k_x, k_eps = jax.random.split(key, 3)

    params = init_params(k_params)             # logical weights
    kparams = prepare_kernel_params(params)    # fused-head weights for the kernel

    # --- small batch (single grid step) ---
    B = 8
    x = jax.random.normal(k_x, (B, TARGET_POINTS, 2), jnp.float32)
    eps = jax.random.normal(k_eps, (B, LATENT_DIM), jnp.float32)

    recon, mu, logvar = airfoil_vae_forward(x, eps, kparams)
    jax.block_until_ready((recon, mu, logvar))

    r_ref, mu_ref, lv_ref = reference_forward(x, eps, params)
    assert recon.shape == (B, INPUT_DIM)
    assert mu.shape == (B, LATENT_DIM)
    assert logvar.shape == (B, LATENT_DIM)
    assert jnp.allclose(recon, r_ref, atol=1e-4)
    assert jnp.allclose(mu, mu_ref, atol=1e-4)
    assert jnp.allclose(logvar, lv_ref, atol=1e-4)

    # --- larger batch: 2 grid steps (v7x megacore path) + ragged last tile ---
    B2 = 200
    xb = jax.random.normal(jax.random.PRNGKey(1), (B2, TARGET_POINTS, 2), jnp.float32)
    epsb = jax.random.normal(jax.random.PRNGKey(2), (B2, LATENT_DIM), jnp.float32)
    recon2, mu2, lv2 = airfoil_vae_forward(xb, epsb, kparams)
    jax.block_until_ready((recon2, mu2, lv2))

    r2_ref, mu2_ref, lv2_ref = reference_forward(xb, epsb, params)
    assert jnp.allclose(recon2, r2_ref, atol=1e-4)
    assert jnp.allclose(mu2, mu2_ref, atol=1e-4)
    assert jnp.allclose(lv2, lv2_ref, atol=1e-4)

    print("KERNEL_OK")
</pallas_src>

<mosaic_0001>
module attributes {stable_mosaic.version = 11 : i64} {
  func.func @_vae_kernel(%arg0: i32, %arg1: memref<8x100xf32, #tpu.memory_space<vmem>>, %arg2: memref<8x48xf32, #tpu.memory_space<vmem>>, %arg3: memref<100x256xf32, #tpu.memory_space<vmem>>, %arg4: memref<1x256xf32, #tpu.memory_space<vmem>>, %arg5: memref<256x128xf32, #tpu.memory_space<vmem>>, %arg6: memref<1x128xf32, #tpu.memory_space<vmem>>, %arg7: memref<128x64xf32, #tpu.memory_space<vmem>>, %arg8: memref<1x64xf32, #tpu.memory_space<vmem>>, %arg9: memref<64x128xf32, #tpu.memory_space<vmem>>, %arg10: memref<1x128xf32, #tpu.memory_space<vmem>>, %arg11: memref<48x64xf32, #tpu.memory_space<vmem>>, %arg12: memref<1x64xf32, #tpu.memory_space<vmem>>, %arg13: memref<64x128xf32, #tpu.memory_space<vmem>>, %arg14: memref<1x128xf32, #tpu.memory_space<vmem>>, %arg15: memref<128x256xf32, #tpu.memory_space<vmem>>, %arg16: memref<1x256xf32, #tpu.memory_space<vmem>>, %arg17: memref<256x100xf32, #tpu.memory_space<vmem>>, %arg18: memref<1x100xf32, #tpu.memory_space<vmem>>, %arg19: memref<8x100xf32, #tpu.memory_space<vmem>>, %arg20: memref<8x48xf32, #tpu.memory_space<vmem>>, %arg21: memref<8x48xf32, #tpu.memory_space<vmem>>) attributes {dimension_semantics = [#tpu.dimension_semantics<parallel>], iteration_bounds = array<i64: 1>, scalar_prefetch = 0 : i64, scratch_operands = 0 : i64, tpu.core_type = #tpu.core_type<tc>, window_params = [{transform_indices = @transform_0, window_bounds = array<i64: 8, 100>}, {transform_indices = @transform_1, window_bounds = array<i64: 8, 48>}, {pipeline_mode = #tpu.pipeline_mode<synchronous>, transform_indices = @transform_2, window_bounds = array<i64: 100, 256>}, {pipeline_mode = #tpu.pipeline_mode<synchronous>, transform_indices = @transform_3, window_bounds = array<i64: 1, 256>}, {pipeline_mode = #tpu.pipeline_mode<synchronous>, transform_indices = @transform_4, window_bounds = array<i64: 256, 128>}, {pipeline_mode = #tpu.pipeline_mode<synchronous>, transform_indices = @transform_5, window_bounds = array<i64: 1, 128>}, {pipeline_mode = #tpu.pipeline_mode<synchronous>, transform_indices = @transform_6, window_bounds = array<i64: 128, 64>}, {pipeline_mode = #tpu.pipeline_mode<synchronous>, transform_indices = @transform_7, window_bounds = array<i64: 1, 64>}, {pipeline_mode = #tpu.pipeline_mode<synchronous>, transform_indices = @transform_8, window_bounds = array<i64: 64, 128>}, {pipeline_mode = #tpu.pipeline_mode<synchronous>, transform_indices = @transform_9, window_bounds = array<i64: 1, 128>}, {pipeline_mode = #tpu.pipeline_mode<synchronous>, transform_indices = @transform_10, window_bounds = array<i64: 48, 64>}, {pipeline_mode = #tpu.pipeline_mode<synchronous>, transform_indices = @transform_11, window_bounds = array<i64: 1, 64>}, {pipeline_mode = #tpu.pipeline_mode<synchronous>, transform_indices = @transform_12, window_bounds = array<i64: 64, 128>}, {pipeline_mode = #tpu.pipeline_mode<synchronous>, transform_indices = @transform_13, window_bounds = array<i64: 1, 128>}, {pipeline_mode = #tpu.pipeline_mode<synchronous>, transform_indices = @transform_14, window_bounds = array<i64: 128, 256>}, {pipeline_mode = #tpu.pipeline_mode<synchronous>, transform_indices = @transform_15, window_bounds = array<i64: 1, 256>}, {pipeline_mode = #tpu.pipeline_mode<synchronous>, transform_indices = @transform_16, window_bounds = array<i64: 256, 100>}, {pipeline_mode = #tpu.pipeline_mode<synchronous>, transform_indices = @transform_17, window_bounds = array<i64: 1, 100>}, {transform_indices = @transform_18, window_bounds = array<i64: 8, 100>}, {transform_indices = @transform_19, window_bounds = array<i64: 8, 48>}, {transform_indices = @transform_20, window_bounds = array<i64: 8, 48>}]} {
    %c0 = arith.constant 0 : index
    %c0_0 = arith.constant 0 : index
    %0 = vector.load %arg1[%c0, %c0_0] : memref<8x100xf32, #tpu.memory_space<vmem>>, vector<8x100xf32>
    %c0_1 = arith.constant 0 : index
    %c0_2 = arith.constant 0 : index
    %1 = vector.load %arg3[%c0_1, %c0_2] : memref<100x256xf32, #tpu.memory_space<vmem>>, vector<100x256xf32>
    %cst = arith.constant dense<0.000000e+00> : vector<8x256xf32>
    %2 = tpu.matmul %0, %1, %cst {dimension_numbers = #tpu.dot_dimension_numbers<[1], [0], [0], [1], [0, 0, 1, 1], [], []>} : vector<8x100xf32>, vector<100x256xf32>, vector<8x256xf32> -> vector<8x256xf32>
    %c0_3 = arith.constant 0 : index
    %c0_4 = arith.constant 0 : index
    %3 = vector.load %arg4[%c0_3, %c0_4] : memref<1x256xf32, #tpu.memory_space<vmem>>, vector<1x256xf32>
    %4 = vector.broadcast %3 : vector<1x256xf32> to vector<8x256xf32>
    %5 = arith.addf %2, %4 : vector<8x256xf32>
    %cst_5 = arith.constant 0.000000e+00 : f32
    %6 = vector.broadcast %cst_5 : f32 to vector<8x256xf32>
    %7 = arith.maximumf %5, %6 : vector<8x256xf32>
    %c0_6 = arith.constant 0 : index
    %c0_7 = arith.constant 0 : index
    %8 = vector.load %arg5[%c0_6, %c0_7] : memref<256x128xf32, #tpu.memory_space<vmem>>, vector<256x128xf32>
    %cst_8 = arith.constant dense<0.000000e+00> : vector<8x128xf32>
    %9 = tpu.matmul %7, %8, %cst_8 {dimension_numbers = #tpu.dot_dimension_numbers<[1], [0], [0], [1], [0, 0, 1, 1], [], []>} : vector<8x256xf32>, vector<256x128xf32>, vector<8x128xf32> -> vector<8x128xf32>
    %c0_9 = arith.constant 0 : index
    %c0_10 = arith.constant 0 : index
    %10 = vector.load %arg6[%c0_9, %c0_10] : memref<1x128xf32, #tpu.memory_space<vmem>>, vector<1x128xf32>
    %11 = vector.broadcast %10 : vector<1x128xf32> to vector<8x128xf32>
    %12 = arith.addf %9, %11 : vector<8x128xf32>
    %cst_11 = arith.constant 0.000000e+00 : f32
    %13 = vector.broadcast %cst_11 : f32 to vector<8x128xf32>
    %14 = arith.maximumf %12, %13 : vector<8x128xf32>
    %c0_12 = arith.constant 0 : index
    %c0_13 = arith.constant 0 : index
    %15 = vector.load %arg7[%c0_12, %c0_13] : memref<128x64xf32, #tpu.memory_space<vmem>>, vector<128x64xf32>
    %cst_14 = arith.constant dense<0.000000e+00> : vector<8x64xf32>
    %16 = tpu.matmul %14, %15, %cst_14 {dimension_numbers = #tpu.dot_dimension_numbers<[1], [0], [0], [1], [0, 0, 1, 1], [], []>} : vector<8x128xf32>, vector<128x64xf32>, vector<8x64xf32> -> vector<8x64xf32>
    %c0_15 = arith.constant 0 : index
    %c0_16 = arith.constant 0 : index
    %17 = vector.load %arg8[%c0_15, %c0_16] : memref<1x64xf32, #tpu.memory_space<vmem>>, vector<1x64xf32>
    %18 = vector.broadcast %17 : vector<1x64xf32> to vector<8x64xf32>
    %19 = arith.addf %16, %18 : vector<8x64xf32>
    %cst_17 = arith.constant 0.000000e+00 : f32
    %20 = vector.broadcast %cst_17 : f32 to vector<8x64xf32>
    %21 = arith.maximumf %19, %20 : vector<8x64xf32>
    %c0_18 = arith.constant 0 : index
    %c0_19 = arith.constant 0 : index
    %22 = vector.load %arg9[%c0_18, %c0_19] : memref<64x128xf32, #tpu.memory_space<vmem>>, vector<64x128xf32>
    %cst_20 = arith.constant dense<0.000000e+00> : vector<8x128xf32>
    %23 = tpu.matmul %21, %22, %cst_20 {dimension_numbers = #tpu.dot_dimension_numbers<[1], [0], [0], [1], [0, 0, 1, 1], [], []>} : vector<8x64xf32>, vector<64x128xf32>, vector<8x128xf32> -> vector<8x128xf32>
    %c0_21 = arith.constant 0 : index
    %c0_22 = arith.constant 0 : index
    %24 = vector.load %arg10[%c0_21, %c0_22] : memref<1x128xf32, #tpu.memory_space<vmem>>, vector<1x128xf32>
    %25 = vector.broadcast %24 : vector<1x128xf32> to vector<8x128xf32>
    %26 = arith.addf %23, %25 : vector<8x128xf32>
    %27 = vector.extract_strided_slice %26 {offsets = [0, 0], sizes = [8, 48], strides = [1, 1]} : vector<8x128xf32> to vector<8x48xf32>
    %c64_i32 = arith.constant 64 : i32
    %28 = tpu.dynamic_rotate %26 by %c64_i32 dim 1 : vector<8x128xf32>, i32 -> vector<8x128xf32>
    %29 = vector.extract_strided_slice %28 {offsets = [0, 0], sizes = [8, 48], strides = [1, 1]} : vector<8x128xf32> to vector<8x48xf32>
    %c0_23 = arith.constant 0 : index
    %c0_24 = arith.constant 0 : index
    %30 = vector.load %arg20[%c0_23, %c0_24] : memref<8x48xf32, #tpu.memory_space<vmem>>, vector<8x48xf32>
    tpu.vector_store %arg20[%c0_23, %c0_24], %27 {strides = array<i32>} : memref<8x48xf32, #tpu.memory_space<vmem>>, vector<8x48xf32>,
    %c0_25 = arith.constant 0 : index
    %c0_26 = arith.constant 0 : index
    %31 = vector.load %arg21[%c0_25, %c0_26] : memref<8x48xf32, #tpu.memory_space<vmem>>, vector<8x48xf32>
    tpu.vector_store %arg21[%c0_25, %c0_26], %29 {strides = array<i32>} : memref<8x48xf32, #tpu.memory_space<vmem>>, vector<8x48xf32>,
    %c0_27 = arith.constant 0 : index
    %c0_28 = arith.constant 0 : index
    %32 = vector.load %arg2[%c0_27, %c0_28] : memref<8x48xf32, #tpu.memory_space<vmem>>, vector<8x48xf32>
    %cst_29 = arith.constant 5.000000e-01 : f32
    %33 = vector.broadcast %cst_29 : f32 to vector<8x48xf32>
    %34 = arith.mulf %33, %29 : vector<8x48xf32>
    %35 = math.exp %34 : vector<8x48xf32>
    %36 = arith.mulf %32, %35 : vector<8x48xf32>
    %37 = arith.addf %27, %36 : vector<8x48xf32>
    %c0_30 = arith.constant 0 : index
    %c0_31 = arith.constant 0 : index
    %38 = vector.load %arg11[%c0_30, %c0_31] : memref<48x64xf32, #tpu.memory_space<vmem>>, vector<48x64xf32>
    %cst_32 = arith.constant dense<0.000000e+00> : vector<8x64xf32>
    %39 = tpu.matmul %37, %38, %cst_32 {dimension_numbers = #tpu.dot_dimension_numbers<[1], [0], [0], [1], [0, 0, 1, 1], [], []>} : vector<8x48xf32>, vector<48x64xf32>, vector<8x64xf32> -> vector<8x64xf32>
    %c0_33 = arith.constant 0 : index
    %c0_34 = arith.constant 0 : index
    %40 = vector.load %arg12[%c0_33, %c0_34] : memref<1x64xf32, #tpu.memory_space<vmem>>, vector<1x64xf32>
    %41 = vector.broadcast %40 : vector<1x64xf32> to vector<8x64xf32>
    %42 = arith.addf %39, %41 : vector<8x64xf32>
    %cst_35 = arith.constant 0.000000e+00 : f32
    %43 = vector.broadcast %cst_35 : f32 to vector<8x64xf32>
    %44 = arith.maximumf %42, %43 : vector<8x64xf32>
    %c0_36 = arith.constant 0 : index
    %c0_37 = arith.constant 0 : index
    %45 = vector.load %arg13[%c0_36, %c0_37] : memref<64x128xf32, #tpu.memory_space<vmem>>, vector<64x128xf32>
    %cst_38 = arith.constant dense<0.000000e+00> : vector<8x128xf32>
    %46 = tpu.matmul %44, %45, %cst_38 {dimension_numbers = #tpu.dot_dimension_numbers<[1], [0], [0], [1], [0, 0, 1, 1], [], []>} : vector<8x64xf32>, vector<64x128xf32>, vector<8x128xf32> -> vector<8x128xf32>
    %c0_39 = arith.constant 0 : index
    %c0_40 = arith.constant 0 : index
    %47 = vector.load %arg14[%c0_39, %c0_40] : memref<1x128xf32, #tpu.memory_space<vmem>>, vector<1x128xf32>
    %48 = vector.broadcast %47 : vector<1x128xf32> to vector<8x128xf32>
    %49 = arith.addf %46, %48 : vector<8x128xf32>
    %cst_41 = arith.constant 0.000000e+00 : f32
    %50 = vector.broadcast %cst_41 : f32 to vector<8x128xf32>
    %51 = arith.maximumf %49, %50 : vector<8x128xf32>
    %c0_42 = arith.constant 0 : index
    %c0_43 = arith.constant 0 : index
    %52 = vector.load %arg15[%c0_42, %c0_43] : memref<128x256xf32, #tpu.memory_space<vmem>>, vector<128x256xf32>
    %cst_44 = arith.constant dense<0.000000e+00> : vector<8x256xf32>
    %53 = tpu.matmul %51, %52, %cst_44 {dimension_numbers = #tpu.dot_dimension_numbers<[1], [0], [0], [1], [0, 0, 1, 1], [], []>} : vector<8x128xf32>, vector<128x256xf32>, vector<8x256xf32> -> vector<8x256xf32>
    %c0_45 = arith.constant 0 : index
    %c0_46 = arith.constant 0 : index
    %54 = vector.load %arg16[%c0_45, %c0_46] : memref<1x256xf32, #tpu.memory_space<vmem>>, vector<1x256xf32>
    %55 = vector.broadcast %54 : vector<1x256xf32> to vector<8x256xf32>
    %56 = arith.addf %53, %55 : vector<8x256xf32>
    %cst_47 = arith.constant 0.000000e+00 : f32
    %57 = vector.broadcast %cst_47 : f32 to vector<8x256xf32>
    %58 = arith.maximumf %56, %57 : vector<8x256xf32>
    %c0_48 = arith.constant 0 : index
    %c0_49 = arith.constant 0 : index
    %59 = vector.load %arg17[%c0_48, %c0_49] : memref<256x100xf32, #tpu.memory_space<vmem>>, vector<256x100xf32>
    %cst_50 = arith.constant dense<0.000000e+00> : vector<8x100xf32>
    %60 = tpu.matmul %58, %59, %cst_50 {dimension_numbers = #tpu.dot_dimension_numbers<[1], [0], [0], [1], [0, 0, 1, 1], [], []>} : vector<8x256xf32>, vector<256x100xf32>, vector<8x100xf32> -> vector<8x100xf32>
    %c0_51 = arith.constant 0 : index
    %c0_52 = arith.constant 0 : index
    %61 = vector.load %arg18[%c0_51, %c0_52] : memref<1x100xf32, #tpu.memory_space<vmem>>, vector<1x100xf32>
    %62 = vector.broadcast %61 : vector<1x100xf32> to vector<8x100xf32>
    %63 = arith.addf %60, %62 : vector<8x100xf32>
    %64 = math.tanh %63 : vector<8x100xf32>
    %c0_53 = arith.constant 0 : index
    %c0_54 = arith.constant 0 : index
    %65 = vector.load %arg19[%c0_53, %c0_54] : memref<8x100xf32, #tpu.memory_space<vmem>>, vector<8x100xf32>
    tpu.vector_store %arg19[%c0_53, %c0_54], %64 {strides = array<i32>} : memref<8x100xf32, #tpu.memory_space<vmem>>, vector<8x100xf32>,
    return
  }
  func.func @transform_0(%arg0: i32) -> (i32, i32) {
    %c0_i32 = arith.constant 0 : i32
    %c0_i32_0 = arith.constant 0 : i32
    return %arg0, %c0_i32 : i32, i32
  }
  func.func @transform_1(%arg0: i32) -> (i32, i32) {
    %c0_i32 = arith.constant 0 : i32
    %c0_i32_0 = arith.constant 0 : i32
    return %arg0, %c0_i32 : i32, i32
  }
  func.func @transform_2(%arg0: i32) -> (i32, i32) {
    %c0_i32 = arith.constant 0 : i32
    %c0_i32_0 = arith.constant 0 : i32
    %c0_i32_1 = arith.constant 0 : i32
    return %c0_i32, %c0_i32_0 : i32, i32
  }
  func.func @transform_3(%arg0: i32) -> (i32, i32) {
    %c0_i32 = arith.constant 0 : i32
    %c0_i32_0 = arith.constant 0 : i32
    %c0_i32_1 = arith.constant 0 : i32
    return %c0_i32, %c0_i32_0 : i32, i32
  }
  func.func @transform_4(%arg0: i32) -> (i32, i32) {
    %c0_i32 = arith.constant 0 : i32
    %c0_i32_0 = arith.constant 0 : i32
    %c0_i32_1 = arith.constant 0 : i32
    return %c0_i32, %c0_i32_0 : i32, i32
  }
  func.func @transform_5(%arg0: i32) -> (i32, i32) {
    %c0_i32 = arith.constant 0 : i32
    %c0_i32_0 = arith.constant 0 : i32
    %c0_i32_1 = arith.constant 0 : i32
    return %c0_i32, %c0_i32_0 : i32, i32
  }
  func.func @transform_6(%arg0: i32) -> (i32, i32) {
    %c0_i32 = arith.constant 0 : i32
    %c0_i32_0 = arith.constant 0 : i32
    %c0_i32_1 = arith.constant 0 : i32
    return %c0_i32, %c0_i32_0 : i32, i32
  }
  func.func @transform_7(%arg0: i32) -> (i32, i32) {
    %c0_i32 = arith.constant 0 : i32
    %c0_i32_0 = arith.constant 0 : i32
    %c0_i32_1 = arith.constant 0 : i32
    return %c0_i32, %c0_i32_0 : i32, i32
  }
  func.func @transform_8(%arg0: i32) -> (i32, i32) {
    %c0_i32 = arith.constant 0 : i32
    %c0_i32_0 = arith.constant 0 : i32
    %c0_i32_1 = arith.constant 0 : i32
    return %c0_i32, %c0_i32_0 : i32, i32
  }
  func.func @transform_9(%arg0: i32) -> (i32, i32) {
    %c0_i32 = arith.constant 0 : i32
    %c0_i32_0 = arith.constant 0 : i32
    %c0_i32_1 = arith.constant 0 : i32
    return %c0_i32, %c0_i32_0 : i32, i32
  }
  func.func @transform_10(%arg0: i32) -> (i32, i32) {
    %c0_i32 = arith.constant 0 : i32
    %c0_i32_0 = arith.constant 0 : i32
    %c0_i32_1 = arith.constant 0 : i32
    return %c0_i32, %c0_i32_0 : i32, i32
  }
  func.func @transform_11(%arg0: i32) -> (i32, i32) {
    %c0_i32 = arith.constant 0 : i32
    %c0_i32_0 = arith.constant 0 : i32
    %c0_i32_1 = arith.constant 0 : i32
    return %c0_i32, %c0_i32_0 : i32, i32
  }
  func.func @transform_12(%arg0: i32) -> (i32, i32) {
    %c0_i32 = arith.constant 0 : i32
    %c0_i32_0 = arith.constant 0 : i32
    %c0_i32_1 = arith.constant 0 : i32
    return %c0_i32, %c0_i32_0 : i32, i32
  }
  func.func @transform_13(%arg0: i32) -> (i32, i32) {
    %c0_i32 = arith.constant 0 : i32
    %c0_i32_0 = arith.constant 0 : i32
    %c0_i32_1 = arith.constant 0 : i32
    return %c0_i32, %c0_i32_0 : i32, i32
  }
  func.func @transform_14(%arg0: i32) -> (i32, i32) {
    %c0_i32 = arith.constant 0 : i32
    %c0_i32_0 = arith.constant 0 : i32
    %c0_i32_1 = arith.constant 0 : i32
    return %c0_i32, %c0_i32_0 : i32, i32
  }
  func.func @transform_15(%arg0: i32) -> (i32, i32) {
    %c0_i32 = arith.constant 0 : i32
    %c0_i32_0 = arith.constant 0 : i32
    %c0_i32_1 = arith.constant 0 : i32
    return %c0_i32, %c0_i32_0 : i32, i32
  }
  func.func @transform_16(%arg0: i32) -> (i32, i32) {
    %c0_i32 = arith.constant 0 : i32
    %c0_i32_0 = arith.constant 0 : i32
    %c0_i32_1 = arith.constant 0 : i32
    return %c0_i32, %c0_i32_0 : i32, i32
  }
  func.func @transform_17(%arg0: i32) -> (i32, i32) {
    %c0_i32 = arith.constant 0 : i32
    %c0_i32_0 = arith.constant 0 : i32
    %c0_i32_1 = arith.constant 0 : i32
    return %c0_i32, %c0_i32_0 : i32, i32
  }
  func.func @transform_18(%arg0: i32) -> (i32, i32) {
    %c0_i32 = arith.constant 0 : i32
    %c0_i32_0 = arith.constant 0 : i32
    return %arg0, %c0_i32 : i32, i32
  }
  func.func @transform_19(%arg0: i32) -> (i32, i32) {
    %c0_i32 = arith.constant 0 : i32
    %c0_i32_0 = arith.constant 0 : i32
    return %arg0, %c0_i32 : i32, i32
  }
  func.func @transform_20(%arg0: i32) -> (i32, i32) {
    %c0_i32 = arith.constant 0 : i32
    %c0_i32_0 = arith.constant 0 : i32
    return %arg0, %c0_i32 : i32, i32
  }
}

</mosaic_0001>

<llo_original>
// kernel: airfoil_vae_forward.1
$region0: #{airfoil_vae_forward.1}
  #allocation0 [shape = 'u32[]', space=smem, size = 0x4, offset = 0x4, fixed_abs, tag = 'smem constant byte address 0x4 - core index']
  #allocation1 [shape = 'u32[144,128]{1,0:T(1,128)}', space=vmem, size = 0x12000, scoped, tag = 'internal scratch']
  %s0 = inlined_call_operand.vmem [shape: f32[8,100], index: 0, kind: input, shape index: {}]
  %s1 = inlined_call_operand.vmem [shape: f32[8,48], index: 1, kind: input, shape index: {}]
  %s2 = inlined_call_operand.vmem [shape: f32[100,256], index: 2, kind: input, shape index: {}]
  %s3 = inlined_call_operand.vmem [shape: f32[1,256], index: 3, kind: input, shape index: {}]
  %s4 = inlined_call_operand.vmem [shape: f32[256,128], index: 4, kind: input, shape index: {}]
  %s5 = inlined_call_operand.vmem [shape: f32[1,128], index: 5, kind: input, shape index: {}]
  %s6 = inlined_call_operand.vmem [shape: f32[128,64], index: 6, kind: input, shape index: {}]
  %s7 = inlined_call_operand.vmem [shape: f32[1,64], index: 7, kind: input, shape index: {}]
  %s8 = inlined_call_operand.vmem [shape: f32[64,128], index: 8, kind: input, shape index: {}]
  %s9 = inlined_call_operand.vmem [shape: f32[1,128], index: 9, kind: input, shape index: {}]
  %s10 = inlined_call_operand.hbm [shape: f32[48,64], index: 10, kind: input, shape index: {}]
  %s11 = inlined_call_operand.vmem [shape: f32[1,64], index: 11, kind: input, shape index: {}]
  %s12 = inlined_call_operand.hbm [shape: f32[64,128], index: 12, kind: input, shape index: {}]
  %s13 = inlined_call_operand.vmem [shape: f32[1,128], index: 13, kind: input, shape index: {}]
  %s14 = inlined_call_operand.vmem [shape: f32[128,256], index: 14, kind: input, shape index: {}]
  %s15 = inlined_call_operand.vmem [shape: f32[1,256], index: 15, kind: input, shape index: {}]
  %s16 = inlined_call_operand.vmem [shape: f32[256,100], index: 16, kind: input, shape index: {}]
  %s17 = inlined_call_operand.vmem [shape: f32[1,100], index: 17, kind: input, shape index: {}]
  %s18 = inlined_call_operand.hbm [shape: f32[8,100], index: 18, kind: output, shape index: {0}]
  %s19 = inlined_call_operand.hbm [shape: f32[8,48], index: 19, kind: output, shape index: {1}]
  %s20 = inlined_call_operand.hbm [shape: f32[8,48], index: 20, kind: output, shape index: {2}]
  %21 = xla_tuple %s18, %s19, %s20
  %s22 = sld [smem:[#allocation0]]
  $region106: #{airfoil_vae_forward.1} parent=0
    _
  %s24 = ssub.s32 1, %s22
  %s25 = scalar_select 0, %s24, %s22
  $region1: #{airfoil_vae_forward.1} parent=0
    #allocation2 [shape = 'u8[24576]{0}', space=vmem, size = 0x6000, scoped, tag = 'input window, operand 10, single buffered']
    #allocation3 [shape = 's32[1]{0}', space=sflag, size = 0x4, scoped, tag = 'scoped memory for airfoil_vae_forward.1']
    #allocation4 [shape = 's32[1]{0}', space=sflag, size = 0x4, scoped, tag = 'scoped memory for airfoil_vae_forward.1']
    #allocation5 [shape = 'u8[32768]{0}', space=vmem, size = 0x8000, scoped, tag = 'input window, operand 12, single buffered']
    #allocation6 [shape = 's32[1]{0}', space=sflag, size = 0x4, scoped, tag = 'scoped memory for airfoil_vae_forward.1']
    #allocation7 [shape = 'u8[4096]{0}', space=vmem, size = 0x1000, scoped, tag = 'output window, operand 0, single buffered']
    #allocation8 [shape = 'u8[4096]{0}', space=vmem, size = 0x1000, scoped, tag = 'output window, operand 1, single buffered']
    #allocation9 [shape = 's32[1]{0}', space=sflag, size = 0x4, scoped, tag = 'scoped memory for airfoil_vae_forward.1']
    #allocation10 [shape = 'u8[4096]{0}', space=vmem, size = 0x1000, scoped, tag = 'output window, operand 2, single buffered']
    %26 = vsyncpa [#allocation3], 0
    %27 = vsyncpa [#allocation6], 0
    %28 = vsyncpa [#allocation4], 0
    %29 = vsyncpa [#allocation9], 0
    // Predicated region
    $region2: #{airfoil_vae_forward.1} parent=1 // pred_check
      _
    $region3: #{airfoil_vae_forward.1} parent=1 // pred_check_branch
      %31 = sbr.rel (0) target = $region5
    $region4: #{airfoil_vae_forward.1} parent=1 // pred_region
      _
    $region5: #{airfoil_vae_forward.1} parent=1 // pred_fallthru
      _
    // Predicated region
    $region6: #{airfoil_vae_forward.1} parent=1 // pred_check
      _
    $region7: #{airfoil_vae_forward.1} parent=1 // pred_check_branch
      %33 = sbr.rel (0) target = $region9
    $region8: #{airfoil_vae_forward.1} parent=1 // pred_region
      _
    $region9: #{airfoil_vae_forward.1} parent=1 // pred_fallthru
      _
    // Predicated region
    $region10: #{airfoil_vae_forward.1} parent=1 // pred_check
      _
    $region11: #{airfoil_vae_forward.1} parent=1 // pred_check_branch
      %35 = sbr.rel (0) target = $region13
    $region12: #{airfoil_vae_forward.1} parent=1 // pred_region
      _
    $region13: #{airfoil_vae_forward.1} parent=1 // pred_fallthru
      _
    // Predicated region
    $region14: #{airfoil_vae_forward.1} parent=1 // pred_check
      _
    $region15: #{airfoil_vae_forward.1} parent=1 // pred_check_branch
      %37 = sbr.rel (0) target = $region17
    $region16: #{airfoil_vae_forward.1} parent=1 // pred_region
      _
    $region17: #{airfoil_vae_forward.1} parent=1 // pred_fallthru
      _
    // Predicated region
    $region18: #{airfoil_vae_forward.1} parent=1 // pred_check
      _
    $region19: #{airfoil_vae_forward.1} parent=1 // pred_check_branch
      %39 = sbr.rel (0) target = $region21
    $region20: #{airfoil_vae_forward.1} parent=1 // pred_region
      _
    $region21: #{airfoil_vae_forward.1} parent=1 // pred_fallthru
      _
    // Predicated region
    $region22: #{airfoil_vae_forward.1} parent=1 // pred_check
      _
    $region23: #{airfoil_vae_forward.1} parent=1 // pred_check_branch
      %41 = sbr.rel (0) target = $region25
    $region24: #{airfoil_vae_forward.1} parent=1 // pred_region
      _
    $region25: #{airfoil_vae_forward.1} parent=1 // pred_fallthru
      _
    // Predicated region
    $region26: #{airfoil_vae_forward.1} parent=1 // pred_check
      _
    $region27: #{airfoil_vae_forward.1} parent=1 // pred_check_branch
      %43 = sbr.rel (0) target = $region29
    $region28: #{airfoil_vae_forward.1} parent=1 // pred_region
      _
    $region29: #{airfoil_vae_forward.1} parent=1 // pred_fallthru
      _
    // Predicated region
    $region30: #{airfoil_vae_forward.1} parent=1 // pred_check
      _
    $region31: #{airfoil_vae_forward.1} parent=1 // pred_check_branch
      %45 = sbr.rel (0) target = $region33
    $region32: #{airfoil_vae_forward.1} parent=1 // pred_region
      _
    $region33: #{airfoil_vae_forward.1} parent=1 // pred_fallthru
      _
    // Predicated region
    $region34: #{airfoil_vae_forward.1} parent=1 // pred_check
      _
    $region35: #{airfoil_vae_forward.1} parent=1 // pred_check_branch
      %47 = sbr.rel (0) target = $region37
    $region36: #{airfoil_vae_forward.1} parent=1 // pred_region
      _
    $region37: #{airfoil_vae_forward.1} parent=1 // pred_fallthru
      _
    // Predicated region
    $region38: #{airfoil_vae_forward.1} parent=1 // pred_check
      _
    $region39: #{airfoil_vae_forward.1} parent=1 // pred_check_branch
      %49 = sbr.rel (0) target = $region41
    $region40: #{airfoil_vae_forward.1} parent=1 // pred_region
      _
    $region41: #{airfoil_vae_forward.1} parent=1 // pred_fallthru
      _
    // Predicated region
    $region42: #{airfoil_vae_forward.1} parent=1 // pred_check
      _
    $region43: #{airfoil_vae_forward.1} parent=1 // pred_check_branch
      %51 = sbr.rel (0) target = $region45
    $region44: #{airfoil_vae_forward.1} parent=1 // pred_region
      %s53 = ssub.s32 768, 768
      %54 = vsyncadd [#allocation3], %s53
      %s55 = sshll.u32 [#allocation2], 4
      %s56 = int_to_ptr.vmem [resolvable:$true] %s55
      %61 = dma.hbm_to_vmem [thread:$0]  %s10, 768, %s56, [#allocation3], 128, 128, 8
    $region45: #{airfoil_vae_forward.1} parent=1 // pred_fallthru
      _
    // Predicated region
    $region46: #{airfoil_vae_forward.1} parent=1 // pred_check
      _
    $region47: #{airfoil_vae_forward.1} parent=1 // pred_check_branch
      %63 = sbr.rel (0) target = $region49
    $region48: #{airfoil_vae_forward.1} parent=1 // pred_region
      _
    $region49: #{airfoil_vae_forward.1} parent=1 // pred_fallthru
      _
    // Predicated region
    $region50: #{airfoil_vae_forward.1} parent=1 // pred_check
      _
    $region51: #{airfoil_vae_forward.1} parent=1 // pred_check_branch
      %65 = sbr.rel (0) target = $region53
    $region52: #{airfoil_vae_forward.1} parent=1 // pred_region
      %s67 = ssub.s32 1024, 1024
      %68 = vsyncadd [#allocation6], %s67
      %s69 = sshll.u32 [#allocation5], 4
      %s70 = int_to_ptr.vmem [resolvable:$true] %s69
      %75 = dma.hbm_to_vmem [thread:$0]  %s12, 1024, %s70, [#allocation6], 128, 128, 8
    $region53: #{airfoil_vae_forward.1} parent=1 // pred_fallthru
      _
    // Predicated region
    $region54: #{airfoil_vae_forward.1} parent=1 // pred_check
      _
    $region55: #{airfoil_vae_forward.1} parent=1 // pred_check_branch
      %77 = sbr.rel (0) target = $region57
    $region56: #{airfoil_vae_forward.1} parent=1 // pred_region
      _
    $region57: #{airfoil_vae_forward.1} parent=1 // pred_fallthru
      _
    // Predicated region
    $region58: #{airfoil_vae_forward.1} parent=1 // pred_check
      _
    $region59: #{airfoil_vae_forward.1} parent=1 // pred_check_branch
      %79 = sbr.rel (0) target = $region61
    $region60: #{airfoil_vae_forward.1} parent=1 // pred_region
      _
    $region61: #{airfoil_vae_forward.1} parent=1 // pred_fallthru
      _
    // Predicated region
    $region62: #{airfoil_vae_forward.1} parent=1 // pred_check
      _
    $region63: #{airfoil_vae_forward.1} parent=1 // pred_check_branch
      %81 = sbr.rel (0) target = $region65
    $region64: #{airfoil_vae_forward.1} parent=1 // pred_region
      _
    $region65: #{airfoil_vae_forward.1} parent=1 // pred_fallthru
      _
    // Predicated region
    $region66: #{airfoil_vae_forward.1} parent=1 // pred_check
      _
    $region67: #{airfoil_vae_forward.1} parent=1 // pred_check_branch
      %83 = sbr.rel (0) target = $region69
    $region68: #{airfoil_vae_forward.1} parent=1 // pred_region
      _
    $region69: #{airfoil_vae_forward.1} parent=1 // pred_fallthru
      _
    // Predicated region
    $region70: #{airfoil_vae_forward.1} parent=1 // pred_check
      _
    $region71: #{airfoil_vae_forward.1} parent=1 // pred_check_branch
      %85 = sbr.rel (0) target = $region73
    $region72: #{airfoil_vae_forward.1} parent=1 // pred_region
      _
    $region73: #{airfoil_vae_forward.1} parent=1 // pred_fallthru
      _
    // Predicated region
    $region74: #{airfoil_vae_forward.1} parent=1 // pred_check
      _
    $region75: #{airfoil_vae_forward.1} parent=1 // pred_check_branch
      %87 = sbr.rel (0) target = $region77
    $region76: #{airfoil_vae_forward.1} parent=1 // pred_region
      %88 = dma.done [#allocation3], 768
    $region77: #{airfoil_vae_forward.1} parent=1 // pred_fallthru
      _
    // Predicated region
    $region78: #{airfoil_vae_forward.1} parent=1 // pred_check
      _
    $region79: #{airfoil_vae_forward.1} parent=1 // pred_check_branch
      %90 = sbr.rel (0) target = $region81
    $region80: #{airfoil_vae_forward.1} parent=1 // pred_region
      %91 = dma.done [#allocation6], 1024
    $region81: #{airfoil_vae_forward.1} parent=1 // pred_fallthru
      _
    %v92 = vld [vmem:[%s0] sm:$0xff]
    %v93 = vld [vmem:[%s2] sm:$0xff]
    %v94 = vld [vmem:[%s2 + $0x8] sm:$0xff]
    %v95 = vld [vmem:[%s2 + $0x10] sm:$0xff]
    %v96 = vld [vmem:[%s2 + $0x18] sm:$0xff]
    %v97 = vld [vmem:[%s2 + $0x20] sm:$0xff]
    %v98 = vld [vmem:[%s2 + $0x28] sm:$0xff]
    %v99 = vld [vmem:[%s2 + $0x30] sm:$0xff]
    %v100 = vld [vmem:[%s2 + $0x38] sm:$0xff]
    %v101 = vld [vmem:[%s2 + $0x40] sm:$0xff]
    %v102 = vld [vmem:[%s2 + $0x48] sm:$0xff]
    %v103 = vld [vmem:[%s2 + $0x50] sm:$0xff]
    %v104 = vld [vmem:[%s2 + $0x58] sm:$0xff]
    %v105 = vld [vmem:[%s2 + $0x60] sm:$0xff]
    %v106 = vld [vmem:[%s2 + $0x68] sm:$0xff]
    %v107 = vld [vmem:[%s2 + $0x70] sm:$0xff]
    %v108 = vld [vmem:[%s2 + $0x78] sm:$0xff]
    %v109 = vld [vmem:[%s2 + $0x80] sm:$0xff]
    %v110 = vld [vmem:[%s2 + $0x88] sm:$0xff]
    %v111 = vld [vmem:[%s2 + $0x90] sm:$0xff]
    %v112 = vld [vmem:[%s2 + $0x98] sm:$0xff]
    %v113 = vld [vmem:[%s2 + $0xa0] sm:$0xff]
    %v114 = vld [vmem:[%s2 + $0xa8] sm:$0xff]
    %v115 = vld [vmem:[%s2 + $0xb0] sm:$0xff]
    %v116 = vld [vmem:[%s2 + $0xb8] sm:$0xff]
    %v117 = vld [vmem:[%s2 + $0xc0] sm:$0xf]
    %v118 = vld [vmem:[%s2 + $0xc8] sm:$0xf]
    %v119 = vld [vmem:[%s3] sm:$0x3]
    %v121 = vlaneseq
    %v122 = vshrl.u32 %v121, 7
    %v123 = vsub.s32 0, %v122
    %v124 = vrot.slane %v119, %v123
    %v125 = vlaneseq
    %v126 = vshrl.u32 %v125, 7
    %v127 = vsub.s32 1, %v126
    %v128 = vrot.slane %v119, %v127
    %vm131 = vcmask 818176
    %v133 = vsel %vm131, %v92, 0
    %vm135 = vcmask 1043456
    %v137 = vsel %vm135, %v117, 0
    %v140 = vsel %vm135, %v118, 0
    %142 = vmatprep.subr.mxu0 0.0
    %143 = vmatpush1.msra.mxu0 0.0
    %144 = vmatprep.subr.mxu0 0.0
    %145 = vmatpush1.msra.mxu0 0.0
    %146 = vmatprep.subr.mxu0 0.0
    %147 = vmatpush1.msra.mxu0 0.0
    %148 = vmatprep.subr.mxu0 %v140
    %149 = vmatpush1.msra.mxu0 %v137
    %150 = vmatprep.subr.mxu0 %v116
    %151 = vmatpush1.msra.mxu0 %v115
    %152 = vmatprep.subr.mxu0 %v114
    %153 = vmatpush1.msra.mxu0 %v113
    %154 = vmatprep.subr.mxu0 %v112
    %155 = vmatpush1.msra.mxu0 %v111
    %156 = vmatprep.subr.mxu0 %v110
    %157 = vmatpush1.msra.mxu0 %v109
    %158 = vmatprep.subr.mxu0 %v108
    %159 = vmatpush1.msra.mxu0 %v107
    %160 = vmatprep.subr.mxu0 %v106
    %161 = vmatpush1.msra.mxu0 %v105
    %162 = vmatprep.subr.mxu0 %v104
    %163 = vmatpush1.msra.mxu0 %v103
    %164 = vmatprep.subr.mxu0 %v102
    %165 = vmatpush1.msra.mxu0 %v101
    %166 = vmatprep.subr.mxu0 %v100
    %167 = vmatpush1.msra.mxu0 %v99
    %168 = vmatprep.subr.mxu0 %v98
    %169 = vmatpush1.msra.mxu0 %v97
    %170 = vmatprep.subr.mxu0 %v96
    %171 = vmatpush1.msra.mxu0 %v95
    %172 = vmatprep.subr.mxu0 %v94
    %173 = vmatpush1.msra.mxu0 %v93
    %174 = vmatprep.subr.mxu0 0.0
    %175 = vmatpush2.msra.mxu0 0.0
    %176 = vmatprep.subr.mxu0 0.0
    %177 = vmatpush2.msra.mxu0 0.0
    %178 = vmatprep.subr.mxu0 0.0
    %179 = vmatpush2.msra.mxu0 0.0
    %180 = vmatprep.subr.mxu0 0.0
    %181 = vmatpush2.msra.mxu0 0.0
    %182 = vmatprep.subr.mxu0 0.0
    %183 = vmatpush2.msra.mxu0 0.0
    %184 = vmatprep.subr.mxu0 0.0
    %185 = vmatpush2.msra.mxu0 0.0
    %186 = vmatprep.subr.mxu0 0.0
    %187 = vmatpush2.msra.mxu0 0.0
    %188 = vmatprep.subr.mxu0 0.0
    %189 = vmatpush2.msra.mxu0 0.0
    %190 = vmatprep.subr.mxu0 0.0
    %191 = vmatpush2.msra.mxu0 0.0
    %192 = vmatprep.subr.mxu0 0.0
    %193 = vmatpush2.msra.mxu0 0.0
    %194 = vmatprep.subr.mxu0 0.0
    %195 = vmatpush2.msra.mxu0 0.0
    %196 = vmatprep.subr.mxu0 0.0
    %197 = vmatpush2.msra.mxu0 0.0
    %198 = vmatprep.subr.mxu0 0.0
    %199 = vmatpush2.msra.mxu0 0.0
    %200 = vmatprep.subr.mxu0 0.0
    %201 = vmatpush2.msra.mxu0 0.0
    %202 = vmatprep.subr.mxu0 0.0
    %203 = vmatpush2.msra.mxu0 0.0
    %204 = vmatprep.subr.mxu0 0.0
    %205 = vmatpush2.msra.mxu0 0.0
    %206 = vmatprep.mubr.f32.mxu0 0.0
    %207 = vmatmul.mubr.f32.gmra.mxu0 %v133
    %v208 = vpop.f32.mrf.mxu0
    %v209 = vadd.f32 %v124, %v208
    %v210 = vpop.f32.mrf.mxu0
    %v211 = vadd.f32 %v128, %v210
    %212 = vdwg.mxu0
    %v213 = vmax.f32 %v209, 0.0
    %v214 = vmax.f32 %v211, 0.0
    %v215 = vld [vmem:[%s4] sm:$0xff]
    %v216 = vld [vmem:[%s4 + $0x8] sm:$0xff]
    %v217 = vld [vmem:[%s4 + $0x10] sm:$0xff]
    %v218 = vld [vmem:[%s4 + $0x18] sm:$0xff]
    %v219 = vld [vmem:[%s4 + $0x20] sm:$0xff]
    %v220 = vld [vmem:[%s4 + $0x28] sm:$0xff]
    %v221 = vld [vmem:[%s4 + $0x30] sm:$0xff]
    %v222 = vld [vmem:[%s4 + $0x38] sm:$0xff]
    %v223 = vld [vmem:[%s4 + $0x40] sm:$0xff]
    %v224 = vld [vmem:[%s4 + $0x48] sm:$0xff]
    %v225 = vld [vmem:[%s4 + $0x50] sm:$0xff]
    %v226 = vld [vmem:[%s4 + $0x58] sm:$0xff]
    %v227 = vld [vmem:[%s4 + $0x60] sm:$0xff]
    %v228 = vld [vmem:[%s4 + $0x68] sm:$0xff]
    %v229 = vld [vmem:[%s4 + $0x70] sm:$0xff]
    %v230 = vld [vmem:[%s4 + $0x78] sm:$0xff]
    %v231 = vld [vmem:[%s4 + $0x80] sm:$0xff]
    %v232 = vld [vmem:[%s4 + $0x88] sm:$0xff]
    %v233 = vld [vmem:[%s4 + $0x90] sm:$0xff]
    %v234 = vld [vmem:[%s4 + $0x98] sm:$0xff]
    %v235 = vld [vmem:[%s4 + $0xa0] sm:$0xff]
    %v236 = vld [vmem:[%s4 + $0xa8] sm:$0xff]
    %v237 = vld [vmem:[%s4 + $0xb0] sm:$0xff]
    %v238 = vld [vmem:[%s4 + $0xb8] sm:$0xff]
    %v239 = vld [vmem:[%s4 + $0xc0] sm:$0xff]
    %v240 = vld [vmem:[%s4 + $0xc8] sm:$0xff]
    %v241 = vld [vmem:[%s4 + $0xd0] sm:$0xff]
    %v242 = vld [vmem:[%s4 + $0xd8] sm:$0xff]
    %v243 = vld [vmem:[%s4 + $0xe0] sm:$0xff]
    %v244 = vld [vmem:[%s4 + $0xe8] sm:$0xff]
    %v245 = vld [vmem:[%s4 + $0xf0] sm:$0xff]
    %v246 = vld [vmem:[%s4 + $0xf8] sm:$0xff]
    %v247 = vld [vmem:[%s5] sm:$0x1]
    %v249 = vlaneseq
    %v250 = vshrl.u32 %v249, 7
    %v251 = vsub.s32 0, %v250
    %v252 = vrot.slane %v247, %v251
    %254 = vmatprep.subr.mxu0 0.0
    %255 = vmatpush1.msra.mxu0 %v230
    %256 = vmatprep.subr.mxu0 0.0
    %257 = vmatpush1.msra.mxu0 %v229
    %258 = vmatprep.subr.mxu0 0.0
    %259 = vmatpush1.msra.mxu0 %v228
    %260 = vmatprep.subr.mxu0 0.0
    %261 = vmatpush1.msra.mxu0 %v227
    %262 = vmatprep.subr.mxu0 0.0
    %263 = vmatpush1.msra.mxu0 %v226
    %264 = vmatprep.subr.mxu0 0.0
    %265 = vmatpush1.msra.mxu0 %v225
    %266 = vmatprep.subr.mxu0 0.0
    %267 = vmatpush1.msra.mxu0 %v224
    %268 = vmatprep.subr.mxu0 0.0
    %269 = vmatpush1.msra.mxu0 %v223
    %270 = vmatprep.subr.mxu0 0.0
    %271 = vmatpush1.msra.mxu0 %v222
    %272 = vmatprep.subr.mxu0 0.0
    %273 = vmatpush1.msra.mxu0 %v221
    %274 = vmatprep.subr.mxu0 0.0
    %275 = vmatpush1.msra.mxu0 %v220
    %276 = vmatprep.subr.mxu0 0.0
    %277 = vmatpush1.msra.mxu0 %v219
    %278 = vmatprep.subr.mxu0 0.0
    %279 = vmatpush1.msra.mxu0 %v218
    %280 = vmatprep.subr.mxu0 0.0
    %281 = vmatpush1.msra.mxu0 %v217
    %282 = vmatprep.subr.mxu0 0.0
    %283 = vmatpush1.msra.mxu0 %v216
    %284 = vmatprep.subr.mxu0 0.0
    %285 = vmatpush1.msra.mxu0 %v215
    %286 = vmatprep.subr.mxu0 0.0
    %287 = vmatpush2.msra.mxu0 %v246
    %288 = vmatprep.subr.mxu0 0.0
    %289 = vmatpush2.msra.mxu0 %v245
    %290 = vmatprep.subr.mxu0 0.0
    %291 = vmatpush2.msra.mxu0 %v244
    %292 = vmatprep.subr.mxu0 0.0
    %293 = vmatpush2.msra.mxu0 %v243
    %294 = vmatprep.subr.mxu0 0.0
    %295 = vmatpush2.msra.mxu0 %v242
    %296 = vmatprep.subr.mxu0 0.0
    %297 = vmatpush2.msra.mxu0 %v241
    %298 = vmatprep.subr.mxu0 0.0
    %299 = vmatpush2.msra.mxu0 %v240
    %300 = vmatprep.subr.mxu0 0.0
    %301 = vmatpush2.msra.mxu0 %v239
    %302 = vmatprep.subr.mxu0 0.0
    %303 = vmatpush2.msra.mxu0 %v238
    %304 = vmatprep.subr.mxu0 0.0
    %305 = vmatpush2.msra.mxu0 %v237
    %306 = vmatprep.subr.mxu0 0.0
    %307 = vmatpush2.msra.mxu0 %v236
    %308 = vmatprep.subr.mxu0 0.0
    %309 = vmatpush2.msra.mxu0 %v235
    %310 = vmatprep.subr.mxu0 0.0
    %311 = vmatpush2.msra.mxu0 %v234
    %312 = vmatprep.subr.mxu0 0.0
    %313 = vmatpush2.msra.mxu0 %v233
    %314 = vmatprep.subr.mxu0 0.0
    %315 = vmatpush2.msra.mxu0 %v232
    %316 = vmatprep.subr.mxu0 0.0
    %317 = vmatpush2.msra.mxu0 %v231
    %318 = vmatprep.mubr.f32.mxu0 %v214
    %319 = vmatmul.mubr.f32.gmra.mxu0 %v213
    %v320 = vpop.f32.mrf.mxu0
    %v321 = vadd.f32 %v252, %v320
    %v322 = vpop.f32.mrf.mxu0
    %323 = vdwg.mxu0
    %v324 = vmax.f32 %v321, 0.0
    %v325 = vld [vmem:[%s6] sm:$0xff]
    %v326 = vld [vmem:[%s6 + $0x8] sm:$0xff]
    %v327 = vld [vmem:[%s6 + $0x10] sm:$0xff]
    %v328 = vld [vmem:[%s6 + $0x18] sm:$0xff]
    %v329 = vld [vmem:[%s6 + $0x20] sm:$0xff]
    %v330 = vld [vmem:[%s6 + $0x28] sm:$0xff]
    %v331 = vld [vmem:[%s6 + $0x30] sm:$0xff]
    %v332 = vld [vmem:[%s6 + $0x38] sm:$0xff]
    %v333 = vld [vmem:[%s6 + $0x40] sm:$0xff]
    %v334 = vld [vmem:[%s6 + $0x48] sm:$0xff]
    %v335 = vld [vmem:[%s6 + $0x50] sm:$0xff]
    %v336 = vld [vmem:[%s6 + $0x58] sm:$0xff]
    %v337 = vld [vmem:[%s6 + $0x60] sm:$0xff]
    %v338 = vld [vmem:[%s6 + $0x68] sm:$0xff]
    %v339 = vld [vmem:[%s6 + $0x70] sm:$0xff]
    %v340 = vld [vmem:[%s6 + $0x78] sm:$0xff]
    %v341 = vld [vmem:[%s7] sm:$0x1]
    %v343 = vlaneseq
    %v344 = vshrl.u32 %v343, 7
    %v345 = vsub.s32 0, %v344
    %v346 = vrot.slane %v341, %v345
    %348 = vmatprep.subr.mxu0 0.0
    %349 = vmatpush1.msra.mxu0 %v340
    %350 = vmatprep.subr.mxu0 0.0
    %351 = vmatpush1.msra.mxu0 %v339
    %352 = vmatprep.subr.mxu0 0.0
    %353 = vmatpush1.msra.mxu0 %v338
    %354 = vmatprep.subr.mxu0 0.0
    %355 = vmatpush1.msra.mxu0 %v337
    %356 = vmatprep.subr.mxu0 0.0
    %357 = vmatpush1.msra.mxu0 %v336
    %358 = vmatprep.subr.mxu0 0.0
    %359 = vmatpush1.msra.mxu0 %v335
    %360 = vmatprep.subr.mxu0 0.0
    %361 = vmatpush1.msra.mxu0 %v334
    %362 = vmatprep.subr.mxu0 0.0
    %363 = vmatpush1.msra.mxu0 %v333
    %364 = vmatprep.subr.mxu0 0.0
    %365 = vmatpush1.msra.mxu0 %v332
    %366 = vmatprep.subr.mxu0 0.0
    %367 = vmatpush1.msra.mxu0 %v331
    %368 = vmatprep.subr.mxu0 0.0
    %369 = vmatpush1.msra.mxu0 %v330
    %370 = vmatprep.subr.mxu0 0.0
    %371 = vmatpush1.msra.mxu0 %v329
    %372 = vmatprep.subr.mxu0 0.0
    %373 = vmatpush1.msra.mxu0 %v328
    %374 = vmatprep.subr.mxu0 0.0
    %375 = vmatpush1.msra.mxu0 %v327
    %376 = vmatprep.subr.mxu0 0.0
    %377 = vmatpush1.msra.mxu0 %v326
    %378 = vmatprep.subr.mxu0 0.0
    %379 = vmatpush1.msra.mxu0 %v325
    %380 = vmatprep.subr.mxu0 0.0
    %381 = vmatpush2.msra.mxu0 0.0
    %382 = vmatprep.subr.mxu0 0.0
    %383 = vmatpush2.msra.mxu0 0.0
    %384 = vmatprep.subr.mxu0 0.0
    %385 = vmatpush2.msra.mxu0 0.0
    %386 = vmatprep.subr.mxu0 0.0
    %387 = vmatpush2.msra.mxu0 0.0
    %388 = vmatprep.subr.mxu0 0.0
    %389 = vmatpush2.msra.mxu0 0.0
    %390 = vmatprep.subr.mxu0 0.0
    %391 = vmatpush2.msra.mxu0 0.0
    %392 = vmatprep.subr.mxu0 0.0
    %393 = vmatpush2.msra.mxu0 0.0
    %394 = vmatprep.subr.mxu0 0.0
    %395 = vmatpush2.msra.mxu0 0.0
    %396 = vmatprep.subr.mxu0 0.0
    %397 = vmatpush2.msra.mxu0 0.0
    %398 = vmatprep.subr.mxu0 0.0
    %399 = vmatpush2.msra.mxu0 0.0
    %400 = vmatprep.subr.mxu0 0.0
    %401 = vmatpush2.msra.mxu0 0.0
    %402 = vmatprep.subr.mxu0 0.0
    %403 = vmatpush2.msra.mxu0 0.0
    %404 = vmatprep.subr.mxu0 0.0
    %405 = vmatpush2.msra.mxu0 0.0
    %406 = vmatprep.subr.mxu0 0.0
    %407 = vmatpush2.msra.mxu0 0.0
    %408 = vmatprep.subr.mxu0 0.0
    %409 = vmatpush2.msra.mxu0 0.0
    %410 = vmatprep.subr.mxu0 0.0
    %411 = vmatpush2.msra.mxu0 0.0
    %412 = vmatprep.mubr.f32.mxu0 0.0
    %413 = vmatmul.mubr.f32.gmra.mxu0 %v324
    %v414 = vpop.f32.mrf.mxu0
    %v415 = vadd.f32 %v346, %v414
    %v416 = vpop.f32.mrf.mxu0
    %417 = vdwg.mxu0
    %v418 = vmax.f32 %v415, 0.0
    %v419 = vld [vmem:[%s8] sm:$0xff]
    %v420 = vld [vmem:[%s8 + $0x8] sm:$0xff]
    %v421 = vld [vmem:[%s8 + $0x10] sm:$0xff]
    %v422 = vld [vmem:[%s8 + $0x18] sm:$0xff]
    %v423 = vld [vmem:[%s8 + $0x20] sm:$0xff]
    %v424 = vld [vmem:[%s8 + $0x28] sm:$0xff]
    %v425 = vld [vmem:[%s8 + $0x30] sm:$0xff]
    %v426 = vld [vmem:[%s8 + $0x38] sm:$0xff]
    %v427 = vld [vmem:[%s9] sm:$0x1]
    %v429 = vlaneseq
    %v430 = vshrl.u32 %v429, 7
    %v431 = vsub.s32 0, %v430
    %v432 = vrot.slane %v427, %v431
    %vm434 = vcmask 523264
    %v436 = vsel %vm434, %v418, 0
    %438 = vmatprep.subr.mxu0 0.0
    %439 = vmatpush1.msra.mxu0 0.0
    %440 = vmatprep.subr.mxu0 0.0
    %441 = vmatpush1.msra.mxu0 0.0
    %442 = vmatprep.subr.mxu0 0.0
    %443 = vmatpush1.msra.mxu0 0.0
    %444 = vmatprep.subr.mxu0 0.0
    %445 = vmatpush1.msra.mxu0 0.0
    %446 = vmatprep.subr.mxu0 0.0
    %447 = vmatpush1.msra.mxu0 0.0
    %448 = vmatprep.subr.mxu0 0.0
    %449 = vmatpush1.msra.mxu0 0.0
    %450 = vmatprep.subr.mxu0 0.0
    %451 = vmatpush1.msra.mxu0 0.0
    %452 = vmatprep.subr.mxu0 0.0
    %453 = vmatpush1.msra.mxu0 0.0
    %454 = vmatprep.subr.mxu0 0.0
    %455 = vmatpush1.msra.mxu0 %v426
    %456 = vmatprep.subr.mxu0 0.0
    %457 = vmatpush1.msra.mxu0 %v425
    %458 = vmatprep.subr.mxu0 0.0
    %459 = vmatpush1.msra.mxu0 %v424
    %460 = vmatprep.subr.mxu0 0.0
    %461 = vmatpush1.msra.mxu0 %v423
    %462 = vmatprep.subr.mxu0 0.0
    %463 = vmatpush1.msra.mxu0 %v422
    %464 = vmatprep.subr.mxu0 0.0
    %465 = vmatpush1.msra.mxu0 %v421
    %466 = vmatprep.subr.mxu0 0.0
    %467 = vmatpush1.msra.mxu0 %v420
    %468 = vmatprep.subr.mxu0 0.0
    %469 = vmatpush1.msra.mxu0 %v419
    %470 = vmatprep.subr.mxu0 0.0
    %471 = vmatpush2.msra.mxu0 0.0
    %472 = vmatprep.subr.mxu0 0.0
    %473 = vmatpush2.msra.mxu0 0.0
    %474 = vmatprep.subr.mxu0 0.0
    %475 = vmatpush2.msra.mxu0 0.0
    %476 = vmatprep.subr.mxu0 0.0
    %477 = vmatpush2.msra.mxu0 0.0
    %478 = vmatprep.subr.mxu0 0.0
    %479 = vmatpush2.msra.mxu0 0.0
    %480 = vmatprep.subr.mxu0 0.0
    %481 = vmatpush2.msra.mxu0 0.0
    %482 = vmatprep.subr.mxu0 0.0
    %483 = vmatpush2.msra.mxu0 0.0
    %484 = vmatprep.subr.mxu0 0.0
    %485 = vmatpush2.msra.mxu0 0.0
    %486 = vmatprep.subr.mxu0 0.0
    %487 = vmatpush2.msra.mxu0 0.0
    %488 = vmatprep.subr.mxu0 0.0
    %489 = vmatpush2.msra.mxu0 0.0
    %490 = vmatprep.subr.mxu0 0.0
    %491 = vmatpush2.msra.mxu0 0.0
    %492 = vmatprep.subr.mxu0 0.0
    %493 = vmatpush2.msra.mxu0 0.0
    %494 = vmatprep.subr.mxu0 0.0
    %495 = vmatpush2.msra.mxu0 0.0
    %496 = vmatprep.subr.mxu0 0.0
    %497 = vmatpush2.msra.mxu0 0.0
    %498 = vmatprep.subr.mxu0 0.0
    %499 = vmatpush2.msra.mxu0 0.0
    %500 = vmatprep.subr.mxu0 0.0
    %501 = vmatpush2.msra.mxu0 0.0
    %502 = vmatprep.mubr.f32.mxu0 0.0
    %503 = vmatmul.mubr.f32.gmra.mxu0 %v436
    %v504 = vpop.f32.mrf.mxu0
    %v505 = vadd.f32 %v432, %v504
    %v506 = vpop.f32.mrf.mxu0
    %507 = vdwg.mxu0
    %508 = vrot.lane.b32.xlu0 %v505, 64
    %v509 = vpop.permute.xlu0 %508
    %vm510 = vcmask 392192
    %511 = vst.msk [vmem:[#allocation8] sm:$0xff] %vm510, %v505
    %512 = vst.msk [vmem:[#allocation10] sm:$0xff] %vm510, %v509
    %v513 = vld [vmem:[%s1] sm:$0xff]
    %v514 = vmul.f32 %v509, 0.5
    %v515 = vmul.f32 %v514, 1.442695
    %v516 = vpow.pop %v515
    %v517 = vmul.f32 %v513, %v516
    %v518 = vadd.f32 %v505, %v517
    %v519 = vld [vmem:[#allocation2] sm:$0xff]
    %v520 = vld [vmem:[#allocation2 + $0x8] sm:$0xff]
    %v521 = vld [vmem:[#allocation2 + $0x10] sm:$0xff]
    %v522 = vld [vmem:[#allocation2 + $0x18] sm:$0xff]
    %v523 = vld [vmem:[#allocation2 + $0x20] sm:$0xff]
    %v524 = vld [vmem:[#allocation2 + $0x28] sm:$0xff]
    %v525 = vld [vmem:[%s11] sm:$0x1]
    %v527 = vlaneseq
    %v528 = vshrl.u32 %v527, 7
    %v529 = vsub.s32 0, %v528
    %v530 = vrot.slane %v525, %v529
    %v533 = vsel %vm510, %v518, 0
    %535 = vmatprep.subr.mxu0 0.0
    %536 = vmatpush1.msra.mxu0 0.0
    %537 = vmatprep.subr.mxu0 0.0
    %538 = vmatpush1.msra.mxu0 0.0
    %539 = vmatprep.subr.mxu0 0.0
    %540 = vmatpush1.msra.mxu0 0.0
    %541 = vmatprep.subr.mxu0 0.0
    %542 = vmatpush1.msra.mxu0 0.0
    %543 = vmatprep.subr.mxu0 0.0
    %544 = vmatpush1.msra.mxu0 0.0
    %545 = vmatprep.subr.mxu0 0.0
    %546 = vmatpush1.msra.mxu0 0.0
    %547 = vmatprep.subr.mxu0 0.0
    %548 = vmatpush1.msra.mxu0 0.0
    %549 = vmatprep.subr.mxu0 0.0
    %550 = vmatpush1.msra.mxu0 0.0
    %551 = vmatprep.subr.mxu0 0.0
    %552 = vmatpush1.msra.mxu0 0.0
    %553 = vmatprep.subr.mxu0 0.0
    %554 = vmatpush1.msra.mxu0 0.0
    %555 = vmatprep.subr.mxu0 0.0
    %556 = vmatpush1.msra.mxu0 %v524
    %557 = vmatprep.subr.mxu0 0.0
    %558 = vmatpush1.msra.mxu0 %v523
    %559 = vmatprep.subr.mxu0 0.0
    %560 = vmatpush1.msra.mxu0 %v522
    %561 = vmatprep.subr.mxu0 0.0
    %562 = vmatpush1.msra.mxu0 %v521
    %563 = vmatprep.subr.mxu0 0.0
    %564 = vmatpush1.msra.mxu0 %v520
    %565 = vmatprep.subr.mxu0 0.0
    %566 = vmatpush1.msra.mxu0 %v519
    %567 = vmatprep.subr.mxu0 0.0
    %568 = vmatpush2.msra.mxu0 0.0
    %569 = vmatprep.subr.mxu0 0.0
    %570 = vmatpush2.msra.mxu0 0.0
    %571 = vmatprep.subr.mxu0 0.0
    %572 = vmatpush2.msra.mxu0 0.0
    %573 = vmatprep.subr.mxu0 0.0
    %574 = vmatpush2.msra.mxu0 0.0
    %575 = vmatprep.subr.mxu0 0.0
    %576 = vmatpush2.msra.mxu0 0.0
    %577 = vmatprep.subr.mxu0 0.0
    %578 = vmatpush2.msra.mxu0 0.0
    %579 = vmatprep.subr.mxu0 0.0
    %580 = vmatpush2.msra.mxu0 0.0
    %581 = vmatprep.subr.mxu0 0.0
    %582 = vmatpush2.msra.mxu0 0.0
    %583 = vmatprep.subr.mxu0 0.0
    %584 = vmatpush2.msra.mxu0 0.0
    %585 = vmatprep.subr.mxu0 0.0
    %586 = vmatpush2.msra.mxu0 0.0
    %587 = vmatprep.subr.mxu0 0.0
    %588 = vmatpush2.msra.mxu0 0.0
    %589 = vmatprep.subr.mxu0 0.0
    %590 = vmatpush2.msra.mxu0 0.0
    %591 = vmatprep.subr.mxu0 0.0
    %592 = vmatpush2.msra.mxu0 0.0
    %593 = vmatprep.subr.mxu0 0.0
    %594 = vmatpush2.msra.mxu0 0.0
    %595 = vmatprep.subr.mxu0 0.0
    %596 = vmatpush2.msra.mxu0 0.0
    %597 = vmatprep.subr.mxu0 0.0
    %598 = vmatpush2.msra.mxu0 0.0
    %599 = vmatprep.mubr.f32.mxu0 0.0
    %600 = vmatmul.mubr.f32.gmra.mxu0 %v533
    %v601 = vpop.f32.mrf.mxu0
    %v602 = vadd.f32 %v530, %v601
    %v603 = vpop.f32.mrf.mxu0
    %604 = vdwg.mxu0
    %v605 = vmax.f32 %v602, 0.0
    %v606 = vld [vmem:[#allocation5] sm:$0xff]
    %v607 = vld [vmem:[#allocation5 + $0x8] sm:$0xff]
    %v608 = vld [vmem:[#allocation5 + $0x10] sm:$0xff]
    %v609 = vld [vmem:[#allocation5 + $0x18] sm:$0xff]
    %v610 = vld [vmem:[#allocation5 + $0x20] sm:$0xff]
    %v611 = vld [vmem:[#allocation5 + $0x28] sm:$0xff]
    %v612 = vld [vmem:[#allocation5 + $0x30] sm:$0xff]
    %v613 = vld [vmem:[#allocation5 + $0x38] sm:$0xff]
    %v614 = vld [vmem:[%s13] sm:$0x1]
    %v616 = vlaneseq
    %v617 = vshrl.u32 %v616, 7
    %v618 = vsub.s32 0, %v617
    %v619 = vrot.slane %v614, %v618
    %v622 = vsel %vm434, %v605, 0
    %624 = vmatprep.subr.mxu0 0.0
    %625 = vmatpush1.msra.mxu0 0.0
    %626 = vmatprep.subr.mxu0 0.0
    %627 = vmatpush1.msra.mxu0 0.0
    %628 = vmatprep.subr.mxu0 0.0
    %629 = vmatpush1.msra.mxu0 0.0
    %630 = vmatprep.subr.mxu0 0.0
    %631 = vmatpush1.msra.mxu0 0.0
    %632 = vmatprep.subr.mxu0 0.0
    %633 = vmatpush1.msra.mxu0 0.0
    %634 = vmatprep.subr.mxu0 0.0
    %635 = vmatpush1.msra.mxu0 0.0
    %636 = vmatprep.subr.mxu0 0.0
    %637 = vmatpush1.msra.mxu0 0.0
    %638 = vmatprep.subr.mxu0 0.0
    %639 = vmatpush1.msra.mxu0 0.0
    %640 = vmatprep.subr.mxu0 0.0
    %641 = vmatpush1.msra.mxu0 %v613
    %642 = vmatprep.subr.mxu0 0.0
    %643 = vmatpush1.msra.mxu0 %v612
    %644 = vmatprep.subr.mxu0 0.0
    %645 = vmatpush1.msra.mxu0 %v611
    %646 = vmatprep.subr.mxu0 0.0
    %647 = vmatpush1.msra.mxu0 %v610
    %648 = vmatprep.subr.mxu0 0.0
    %649 = vmatpush1.msra.mxu0 %v609
    %650 = vmatprep.subr.mxu0 0.0
    %651 = vmatpush1.msra.mxu0 %v608
    %652 = vmatprep.subr.mxu0 0.0
    %653 = vmatpush1.msra.mxu0 %v607
    %654 = vmatprep.subr.mxu0 0.0
    %655 = vmatpush1.msra.mxu0 %v606
    %656 = vmatprep.subr.mxu0 0.0
    %657 = vmatpush2.msra.mxu0 0.0
    %658 = vmatprep.subr.mxu0 0.0
    %659 = vmatpush2.msra.mxu0 0.0
    %660 = vmatprep.subr.mxu0 0.0
    %661 = vmatpush2.msra.mxu0 0.0
    %662 = vmatprep.subr.mxu0 0.0
    %663 = vmatpush2.msra.mxu0 0.0
    %664 = vmatprep.subr.mxu0 0.0
    %665 = vmatpush2.msra.mxu0 0.0
    %666 = vmatprep.subr.mxu0 0.0
    %667 = vmatpush2.msra.mxu0 0.0
    %668 = vmatprep.subr.mxu0 0.0
    %669 = vmatpush2.msra.mxu0 0.0
    %670 = vmatprep.subr.mxu0 0.0
    %671 = vmatpush2.msra.mxu0 0.0
    %672 = vmatprep.subr.mxu0 0.0
    %673 = vmatpush2.msra.mxu0 0.0
    %674 = vmatprep.subr.mxu0 0.0
    %675 = vmatpush2.msra.mxu0 0.0
    %676 = vmatprep.subr.mxu0 0.0
    %677 = vmatpush2.msra.mxu0 0.0
    %678 = vmatprep.subr.mxu0 0.0
    %679 = vmatpush2.msra.mxu0 0.0
    %680 = vmatprep.subr.mxu0 0.0
    %681 = vmatpush2.msra.mxu0 0.0
    %682 = vmatprep.subr.mxu0 0.0
    %683 = vmatpush2.msra.mxu0 0.0
    %684 = vmatprep.subr.mxu0 0.0
    %685 = vmatpush2.msra.mxu0 0.0
    %686 = vmatprep.subr.mxu0 0.0
    %687 = vmatpush2.msra.mxu0 0.0
    %688 = vmatprep.mubr.f32.mxu0 0.0
    %689 = vmatmul.mubr.f32.gmra.mxu0 %v622
    %v690 = vpop.f32.mrf.mxu0
    %v691 = vadd.f32 %v619, %v690
    %v692 = vpop.f32.mrf.mxu0
    %693 = vdwg.mxu0
    %v694 = vmax.f32 %v691, 0.0
    %v695 = vld [vmem:[%s14] sm:$0xff]
    %v696 = vld [vmem:[%s14 + $0x8] sm:$0xff]
    %v697 = vld [vmem:[%s14 + $0x10] sm:$0xff]
    %v698 = vld [vmem:[%s14 + $0x18] sm:$0xff]
    %v699 = vld [vmem:[%s14 + $0x20] sm:$0xff]
    %v700 = vld [vmem:[%s14 + $0x28] sm:$0xff]
    %v701 = vld [vmem:[%s14 + $0x30] sm:$0xff]
    %v702 = vld [vmem:[%s14 + $0x38] sm:$0xff]
    %v703 = vld [vmem:[%s14 + $0x40] sm:$0xff]
    %v704 = vld [vmem:[%s14 + $0x48] sm:$0xff]
    %v705 = vld [vmem:[%s14 + $0x50] sm:$0xff]
    %v706 = vld [vmem:[%s14 + $0x58] sm:$0xff]
    %v707 = vld [vmem:[%s14 + $0x60] sm:$0xff]
    %v708 = vld [vmem:[%s14 + $0x68] sm:$0xff]
    %v709 = vld [vmem:[%s14 + $0x70] sm:$0xff]
    %v710 = vld [vmem:[%s14 + $0x78] sm:$0xff]
    %v711 = vld [vmem:[%s14 + $0x80] sm:$0xff]
    %v712 = vld [vmem:[%s14 + $0x88] sm:$0xff]
    %v713 = vld [vmem:[%s14 + $0x90] sm:$0xff]
    %v714 = vld [vmem:[%s14 + $0x98] sm:$0xff]
    %v715 = vld [vmem:[%s14 + $0xa0] sm:$0xff]
    %v716 = vld [vmem:[%s14 + $0xa8] sm:$0xff]
    %v717 = vld [vmem:[%s14 + $0xb0] sm:$0xff]
    %v718 = vld [vmem:[%s14 + $0xb8] sm:$0xff]
    %v719 = vld [vmem:[%s14 + $0xc0] sm:$0xff]
    %v720 = vld [vmem:[%s14 + $0xc8] sm:$0xff]
    %v721 = vld [vmem:[%s14 + $0xd0] sm:$0xff]
    %v722 = vld [vmem:[%s14 + $0xd8] sm:$0xff]
    %v723 = vld [vmem:[%s14 + $0xe0] sm:$0xff]
    %v724 = vld [vmem:[%s14 + $0xe8] sm:$0xff]
    %v725 = vld [vmem:[%s14 + $0xf0] sm:$0xff]
    %v726 = vld [vmem:[%s14 + $0xf8] sm:$0xff]
    %v727 = vld [vmem:[%s15] sm:$0x3]
    %v729 = vlaneseq
    %v730 = vshrl.u32 %v729, 7
    %v731 = vsub.s32 0, %v730
    %v732 = vrot.slane %v727, %v731
    %v733 = vlaneseq
    %v734 = vshrl.u32 %v733, 7
    %v735 = vsub.s32 1, %v734
    %v736 = vrot.slane %v727, %v735
    %739 = vmatprep.subr.mxu0 %v726
    %740 = vmatpush1.msra.mxu0 %v725
    %741 = vmatprep.subr.mxu0 %v724
    %742 = vmatpush1.msra.mxu0 %v723
    %743 = vmatprep.subr.mxu0 %v722
    %744 = vmatpush1.msra.mxu0 %v721
    %745 = vmatprep.subr.mxu0 %v720
    %746 = vmatpush1.msra.mxu0 %v719
    %747 = vmatprep.subr.mxu0 %v718
    %748 = vmatpush1.msra.mxu0 %v717
    %749 = vmatprep.subr.mxu0 %v716
    %750 = vmatpush1.msra.mxu0 %v715
    %751 = vmatprep.subr.mxu0 %v714
    %752 = vmatpush1.msra.mxu0 %v713
    %753 = vmatprep.subr.mxu0 %v712
    %754 = vmatpush1.msra.mxu0 %v711
    %755 = vmatprep.subr.mxu0 %v710
    %756 = vmatpush1.msra.mxu0 %v709
    %757 = vmatprep.subr.mxu0 %v708
    %758 = vmatpush1.msra.mxu0 %v707
    %759 = vmatprep.subr.mxu0 %v706
    %760 = vmatpush1.msra.mxu0 %v705
    %761 = vmatprep.subr.mxu0 %v704
    %762 = vmatpush1.msra.mxu0 %v703
    %763 = vmatprep.subr.mxu0 %v702
    %764 = vmatpush1.msra.mxu0 %v701
    %765 = vmatprep.subr.mxu0 %v700
    %766 = vmatpush1.msra.mxu0 %v699
    %767 = vmatprep.subr.mxu0 %v698
    %768 = vmatpush1.msra.mxu0 %v697
    %769 = vmatprep.subr.mxu0 %v696
    %770 = vmatpush1.msra.mxu0 %v695
    %771 = vmatprep.subr.mxu0 0.0
    %772 = vmatpush2.msra.mxu0 0.0
    %773 = vmatprep.subr.mxu0 0.0
    %774 = vmatpush2.msra.mxu0 0.0
    %775 = vmatprep.subr.mxu0 0.0
    %776 = vmatpush2.msra.mxu0 0.0
    %777 = vmatprep.subr.mxu0 0.0
    %778 = vmatpush2.msra.mxu0 0.0
    %779 = vmatprep.subr.mxu0 0.0
    %780 = vmatpush2.msra.mxu0 0.0
    %781 = vmatprep.subr.mxu0 0.0
    %782 = vmatpush2.msra.mxu0 0.0
    %783 = vmatprep.subr.mxu0 0.0
    %784 = vmatpush2.msra.mxu0 0.0
    %785 = vmatprep.subr.mxu0 0.0
    %786 = vmatpush2.msra.mxu0 0.0
    %787 = vmatprep.subr.mxu0 0.0
    %788 = vmatpush2.msra.mxu0 0.0
    %789 = vmatprep.subr.mxu0 0.0
    %790 = vmatpush2.msra.mxu0 0.0
    %791 = vmatprep.subr.mxu0 0.0
    %792 = vmatpush2.msra.mxu0 0.0
    %793 = vmatprep.subr.mxu0 0.0
    %794 = vmatpush2.msra.mxu0 0.0
    %795 = vmatprep.subr.mxu0 0.0
    %796 = vmatpush2.msra.mxu0 0.0
    %797 = vmatprep.subr.mxu0 0.0
    %798 = vmatpush2.msra.mxu0 0.0
    %799 = vmatprep.subr.mxu0 0.0
    %800 = vmatpush2.msra.mxu0 0.0
    %801 = vmatprep.subr.mxu0 0.0
    %802 = vmatpush2.msra.mxu0 0.0
    %803 = vmatprep.mubr.f32.mxu0 0.0
    %804 = vmatmul.mubr.f32.gmra.mxu0 %v694
    %v805 = vpop.f32.mrf.mxu0
    %v806 = vadd.f32 %v732, %v805
    %v807 = vpop.f32.mrf.mxu0
    %v808 = vadd.f32 %v736, %v807
    %809 = vdwg.mxu0
    %v810 = vmax.f32 %v806, 0.0
    %v811 = vmax.f32 %v808, 0.0
    %v812 = vld [vmem:[%s16] sm:$0xff]
    %v813 = vld [vmem:[%s16 + $0x8] sm:$0xff]
    %v814 = vld [vmem:[%s16 + $0x10] sm:$0xff]
    %v815 = vld [vmem:[%s16 + $0x18] sm:$0xff]
    %v816 = vld [vmem:[%s16 + $0x20] sm:$0xff]
    %v817 = vld [vmem:[%s16 + $0x28] sm:$0xff]
    %v818 = vld [vmem:[%s16 + $0x30] sm:$0xff]
    %v819 = vld [vmem:[%s16 + $0x38] sm:$0xff]
    %v820 = vld [vmem:[%s16 + $0x40] sm:$0xff]
    %v821 = vld [vmem:[%s16 + $0x48] sm:$0xff]
    %v822 = vld [vmem:[%s16 + $0x50] sm:$0xff]
    %v823 = vld [vmem:[%s16 + $0x58] sm:$0xff]
    %v824 = vld [vmem:[%s16 + $0x60] sm:$0xff]
    %v825 = vld [vmem:[%s16 + $0x68] sm:$0xff]
    %v826 = vld [vmem:[%s16 + $0x70] sm:$0xff]
    %v827 = vld [vmem:[%s16 + $0x78] sm:$0xff]
    %v828 = vld [vmem:[%s16 + $0x80] sm:$0xff]
    %v829 = vld [vmem:[%s16 + $0x88] sm:$0xff]
    %v830 = vld [vmem:[%s16 + $0x90] sm:$0xff]
    %v831 = vld [vmem:[%s16 + $0x98] sm:$0xff]
    %v832 = vld [vmem:[%s16 + $0xa0] sm:$0xff]
    %v833 = vld [vmem:[%s16 + $0xa8] sm:$0xff]
    %v834 = vld [vmem:[%s16 + $0xb0] sm:$0xff]
    %v835 = vld [vmem:[%s16 + $0xb8] sm:$0xff]
    %v836 = vld [vmem:[%s16 + $0xc0] sm:$0xff]
    %v837 = vld [vmem:[%s16 + $0xc8] sm:$0xff]
    %v838 = vld [vmem:[%s16 + $0xd0] sm:$0xff]
    %v839 = vld [vmem:[%s16 + $0xd8] sm:$0xff]
    %v840 = vld [vmem:[%s16 + $0xe0] sm:$0xff]
    %v841 = vld [vmem:[%s16 + $0xe8] sm:$0xff]
    %v842 = vld [vmem:[%s16 + $0xf0] sm:$0xff]
    %v843 = vld [vmem:[%s16 + $0xf8] sm:$0xff]
    %v844 = vld [vmem:[%s17] sm:$0x1]
    %v846 = vlaneseq
    %v847 = vshrl.u32 %v846, 7
    %v848 = vsub.s32 0, %v847
    %v849 = vrot.slane %v844, %v848
    %851 = vmatprep.subr.mxu0 0.0
    %852 = vmatpush1.msra.mxu0 %v827
    %853 = vmatprep.subr.mxu0 0.0
    %854 = vmatpush1.msra.mxu0 %v826
    %855 = vmatprep.subr.mxu0 0.0
    %856 = vmatpush1.msra.mxu0 %v825
    %857 = vmatprep.subr.mxu0 0.0
    %858 = vmatpush1.msra.mxu0 %v824
    %859 = vmatprep.subr.mxu0 0.0
    %860 = vmatpush1.msra.mxu0 %v823
    %861 = vmatprep.subr.mxu0 0.0
    %862 = vmatpush1.msra.mxu0 %v822
    %863 = vmatprep.subr.mxu0 0.0
    %864 = vmatpush1.msra.mxu0 %v821
    %865 = vmatprep.subr.mxu0 0.0
    %866 = vmatpush1.msra.mxu0 %v820
    %867 = vmatprep.subr.mxu0 0.0
    %868 = vmatpush1.msra.mxu0 %v819
    %869 = vmatprep.subr.mxu0 0.0
    %870 = vmatpush1.msra.mxu0 %v818
    %871 = vmatprep.subr.mxu0 0.0
    %872 = vmatpush1.msra.mxu0 %v817
    %873 = vmatprep.subr.mxu0 0.0
    %874 = vmatpush1.msra.mxu0 %v816
    %875 = vmatprep.subr.mxu0 0.0
    %876 = vmatpush1.msra.mxu0 %v815
    %877 = vmatprep.subr.mxu0 0.0
    %878 = vmatpush1.msra.mxu0 %v814
    %879 = vmatprep.subr.mxu0 0.0
    %880 = vmatpush1.msra.mxu0 %v813
    %881 = vmatprep.subr.mxu0 0.0
    %882 = vmatpush1.msra.mxu0 %v812
    %883 = vmatprep.subr.mxu0 0.0
    %884 = vmatpush2.msra.mxu0 %v843
    %885 = vmatprep.subr.mxu0 0.0
    %886 = vmatpush2.msra.mxu0 %v842
    %887 = vmatprep.subr.mxu0 0.0
    %888 = vmatpush2.msra.mxu0 %v841
    %889 = vmatprep.subr.mxu0 0.0
    %890 = vmatpush2.msra.mxu0 %v840
    %891 = vmatprep.subr.mxu0 0.0
    %892 = vmatpush2.msra.mxu0 %v839
    %893 = vmatprep.subr.mxu0 0.0
    %894 = vmatpush2.msra.mxu0 %v838
    %895 = vmatprep.subr.mxu0 0.0
    %896 = vmatpush2.msra.mxu0 %v837
    %897 = vmatprep.subr.mxu0 0.0
    %898 = vmatpush2.msra.mxu0 %v836
    %899 = vmatprep.subr.mxu0 0.0
    %900 = vmatpush2.msra.mxu0 %v835
    %901 = vmatprep.subr.mxu0 0.0
    %902 = vmatpush2.msra.mxu0 %v834
    %903 = vmatprep.subr.mxu0 0.0
    %904 = vmatpush2.msra.mxu0 %v833
    %905 = vmatprep.subr.mxu0 0.0
    %906 = vmatpush2.msra.mxu0 %v832
    %907 = vmatprep.subr.mxu0 0.0
    %908 = vmatpush2.msra.mxu0 %v831
    %909 = vmatprep.subr.mxu0 0.0
    %910 = vmatpush2.msra.mxu0 %v830
    %911 = vmatprep.subr.mxu0 0.0
    %912 = vmatpush2.msra.mxu0 %v829
    %913 = vmatprep.subr.mxu0 0.0
    %914 = vmatpush2.msra.mxu0 %v828
    %915 = vmatprep.mubr.f32.mxu0 %v811
    %916 = vmatmul.mubr.f32.gmra.mxu0 %v810
    %v917 = vpop.f32.mrf.mxu0
    %v918 = vadd.f32 %v849, %v917
    %v919 = vpop.f32.mrf.mxu0
    %920 = vdwg.mxu0
    %v921 = vtanh.pop %v918
    %922 = vst.msk [vmem:[#allocation7] sm:$0xff] %vm131, %v921
    // Predicated region
    $region82: #{airfoil_vae_forward.1} parent=1 // pred_check
      _
    $region83: #{airfoil_vae_forward.1} parent=1 // pred_check_branch
      %924 = sbr.rel (0) target = $region85
    $region84: #{airfoil_vae_forward.1} parent=1 // pred_region
      %s926 = ssub.s32 128, 128
      %927 = vsyncadd [#allocation4], %s926
      %s929 = sshll.u32 [#allocation7], 4
      %s930 = int_to_ptr.vmem [resolvable:$true] %s929
      %932 = dma.vmem_to_hbm [thread:$0]  %s930, 128, %s18, [#allocation4]
    $region85: #{airfoil_vae_forward.1} parent=1 // pred_fallthru
      _
    // Predicated region
    $region86: #{airfoil_vae_forward.1} parent=1 // pred_check
      _
    $region87: #{airfoil_vae_forward.1} parent=1 // pred_check_branch
      %934 = sbr.rel (0) target = $region89
    $region88: #{airfoil_vae_forward.1} parent=1 // pred_region
      %s936 = ssub.s32 128, 128
      %937 = vsyncadd [#allocation9], %s936
      %s939 = sshll.u32 [#allocation8], 4
      %s940 = int_to_ptr.vmem [resolvable:$true] %s939
      %942 = dma.vmem_to_hbm [thread:$0]  %s940, 128, %s19, [#allocation9]
    $region89: #{airfoil_vae_forward.1} parent=1 // pred_fallthru
      _
    // Predicated region
    $region90: #{airfoil_vae_forward.1} parent=1 // pred_check
      _
    $region91: #{airfoil_vae_forward.1} parent=1 // pred_check_branch
      %944 = sbr.rel (0) target = $region93
    $region92: #{airfoil_vae_forward.1} parent=1 // pred_region
      %s946 = ssub.s32 128, 128
      %947 = vsyncadd [#allocation9], %s946
      %s949 = sshll.u32 [#allocation10], 4
      %s950 = int_to_ptr.vmem [resolvable:$true] %s949
      %952 = dma.vmem_to_hbm [thread:$0]  %s950, 128, %s20, [#allocation9]
    $region93: #{airfoil_vae_forward.1} parent=1 // pred_fallthru
      _
    // Predicated region
    $region94: #{airfoil_vae_forward.1} parent=1 // pred_check
      _
    $region95: #{airfoil_vae_forward.1} parent=1 // pred_check_branch
      %954 = sbr.rel (0) target = $region97
    $region96: #{airfoil_vae_forward.1} parent=1 // pred_region
      %955 = dma.done [#allocation4], 128
    $region97: #{airfoil_vae_forward.1} parent=1 // pred_fallthru
      _
    // Predicated region
    $region98: #{airfoil_vae_forward.1} parent=1 // pred_check
      _
    $region99: #{airfoil_vae_forward.1} parent=1 // pred_check_branch
      %957 = sbr.rel (0) target = $region101
    $region100: #{airfoil_vae_forward.1} parent=1 // pred_region
      %958 = dma.done [#allocation9], 128
    $region101: #{airfoil_vae_forward.1} parent=1 // pred_fallthru
      _
    // Predicated region
    $region102: #{airfoil_vae_forward.1} parent=1 // pred_check
      _
    $region103: #{airfoil_vae_forward.1} parent=1 // pred_check_branch
      %960 = sbr.rel (0) target = $region105
    $region104: #{airfoil_vae_forward.1} parent=1 // pred_region
      %961 = dma.done [#allocation9], 128
    $region105: #{airfoil_vae_forward.1} parent=1 // pred_fallthru
      _
    %962 = vsyncpa [#allocation3], 1
    %963 = vsyncpa [#allocation6], 1
    %964 = vsyncpa [#allocation4], 1
    %965 = vsyncpa [#allocation9], 1

</llo_original>
